<compile_context>
chip_gen: v7x
topology: tpu7x:2x2x1
jax: 0.10.0
libtpu: 0.0.40
codegen_flags: <defaults>
</compile_context>

<pallas_src>
import jax
import jax.numpy as jnp
from jax.experimental import pallas as pl
from jax.experimental.pallas import tpu as pltpu


def _round_up(x: int, m: int) -> int:
    return ((x + m - 1) // m) * m


def lightgcn_kernel(adj_ref, e0u_ref, e0i_ref, u_out_ref, i_out_ref):
    """Whole 2-layer LightGCN propagation in one kernel invocation.

    adj_ref   : (Up, Ip) bf16 0/1 user->item adjacency (zero padded)
    e0u_ref   : (Up, Dp) f32 layer-0 user embeddings   (zero padded)
    e0i_ref   : (Ip, Dp) f32 layer-0 item embeddings   (zero padded)
    u_out_ref : (Up, Dp) f32 final user embeddings
    i_out_ref : (Ip, Dp) f32 final item embeddings
    """
    # bf16 transport halves HBM->VMEM bytes for the dominant array; the single
    # upcast is exact (values are 0/1) and keeps all math in f32.
    A = adj_ref[...].astype(jnp.float32)          # (Up, Ip)
    # One in-kernel transpose (XLU, VMEM-local) replaces the second HBM copy.
    AT = A.T                                      # (Ip, Up)

    e0u = e0u_ref[...]                            # (Up, Dp) f32
    e0i = e0i_ref[...]                            # (Ip, Dp) f32

    # Degrees; zero-degree (incl. padded) nodes -> mean = 0 (DGL semantics).
    deg_u = jnp.sum(A, axis=1, keepdims=True)     # (Up, 1)
    deg_i = jnp.sum(AT, axis=1, keepdims=True)    # (Ip, 1)
    inv_u = jnp.where(deg_u > 0.0, 1.0 / deg_u, 0.0)   # exact reciprocal
    inv_i = jnp.where(deg_i > 0.0, 1.0 / deg_i, 0.0)

    # Layer 1: mean of neighbor layer-0 embeddings (MXU matmuls, f32 accum).
    e1u = jnp.dot(A, e0i, preferred_element_type=jnp.float32) * inv_u   # (Up, Dp)
    e1i = jnp.dot(AT, e0u, preferred_element_type=jnp.float32) * inv_i  # (Ip, Dp)

    # Layer 2: mean of neighbor layer-1 embeddings.
    e2u = jnp.dot(A, e1i, preferred_element_type=jnp.float32) * inv_u   # (Up, Dp)
    e2i = jnp.dot(AT, e1u, preferred_element_type=jnp.float32) * inv_i  # (Ip, Dp)

    u_out_ref[...] = ((e0u + e1u + e2u) / 3.0).astype(u_out_ref.dtype)
    i_out_ref[...] = ((e0i + e1i + e2i) / 3.0).astype(i_out_ref.dtype)


@jax.jit
def two_layer_lightgcn(adj, e0_user, e0_item):
    """Wrapper: pad to lane-aligned shapes, run one pallas_call, slice back."""
    U, I = adj.shape
    D = e0_user.shape[1]
    Up, Ip, Dp = _round_up(U, 128), _round_up(I, 128), _round_up(D, 128)

    # Zero-pad: padded rows/cols have zero degree -> exact zeros, sliced off below.
    adj_p = jnp.pad(adj.astype(jnp.bfloat16), ((0, Up - U), (0, Ip - I)))
    e0u_p = jnp.pad(e0_user.astype(jnp.float32), ((0, Up - U), (0, Dp - D)))
    e0i_p = jnp.pad(e0_item.astype(jnp.float32), ((0, Ip - I), (0, Dp - D)))

    out_user_p, out_item_p = pl.pallas_call(
        lightgcn_kernel,
        out_shape=(
            jax.ShapeDtypeStruct((Up, Dp), jnp.float32),
            jax.ShapeDtypeStruct((Ip, Dp), jnp.float32),
        ),
        grid=(1,),
        in_specs=[
            pl.BlockSpec((Up, Ip), lambda g: (0, 0)),
            pl.BlockSpec((Up, Dp), lambda g: (0, 0)),
            pl.BlockSpec((Ip, Dp), lambda g: (0, 0)),
        ],
        out_specs=(
            pl.BlockSpec((Up, Dp), lambda g: (0, 0)),
            pl.BlockSpec((Ip, Dp), lambda g: (0, 0)),
        ),
        compiler_params=pltpu.CompilerParams(
            dimension_semantics=("arbitrary",),
        ),
    )(adj_p, e0u_p, e0i_p)

    return {"user": out_user_p[:U, :D], "item": out_item_p[:I, :D]}


def reference_lightgcn(adj, e0_user, e0_item):
    """Pure-JAX fp32 reference of the same forward (for correctness check)."""
    adj = adj.astype(jnp.float32)
    deg_u = jnp.sum(adj, axis=1, keepdims=True)
    deg_i = jnp.sum(adj, axis=0)[:, None]
    inv_u = jnp.where(deg_u > 0, 1.0 / deg_u, 0.0)
    inv_i = jnp.where(deg_i > 0, 1.0 / deg_i, 0.0)

    def prop(hu, hi):
        return (adj @ hi) * inv_u, (adj.T @ hu) * inv_i

    e1u, e1i = prop(e0_user, e0_item)
    e2u, e2i = prop(e1u, e1i)
    return (e0_user + e1u + e2u) / 3.0, (e0_item + e1i + e2i) / 3.0


if __name__ == "__main__":
    # Small, module-consistent shapes: 64 users, 48 items, emb_dim = 32.
    num_users, num_items, emb_dim = 64, 48, 32

    key = jax.random.PRNGKey(0)
    k_u, k_i, k_a = jax.random.split(key, 3)

    # nn.Embedding default init ~ N(0, 1)
    e0_user = jax.random.normal(k_u, (num_users, emb_dim), dtype=jnp.float32)
    e0_item = jax.random.normal(k_i, (num_items, emb_dim), dtype=jnp.float32)

    # Deterministic random bipartite graph (dense 0/1 adjacency).
    adj = (jax.random.uniform(k_a, (num_users, num_items)) < 0.3).astype(jnp.float32)

    out = two_layer_lightgcn(adj, e0_user, e0_item)
    jax.block_until_ready(out)

    ref_u, ref_i = reference_lightgcn(adj, e0_user, e0_item)
    assert jnp.allclose(out["user"], ref_u, atol=1e-5, rtol=1e-5)
    assert jnp.allclose(out["item"], ref_i, atol=1e-5, rtol=1e-5)

    print("KERNEL_OK")
</pallas_src>

<mosaic_0001>
module attributes {stable_mosaic.version = 11 : i64} {
  func.func @lightgcn_kernel(%arg0: i32, %arg1: memref<128x128xbf16, #tpu.memory_space<vmem>>, %arg2: memref<128x128xf32, #tpu.memory_space<vmem>>, %arg3: memref<128x128xf32, #tpu.memory_space<vmem>>, %arg4: memref<128x128xf32, #tpu.memory_space<vmem>>, %arg5: memref<128x128xf32, #tpu.memory_space<vmem>>) attributes {dimension_semantics = [#tpu.dimension_semantics<arbitrary>], iteration_bounds = array<i64: 1>, scalar_prefetch = 0 : i64, scratch_operands = 0 : i64, tpu.core_type = #tpu.core_type<tc>, window_params = [{pipeline_mode = #tpu.pipeline_mode<synchronous>, transform_indices = @transform_0, window_bounds = array<i64: 128, 128>}, {pipeline_mode = #tpu.pipeline_mode<synchronous>, transform_indices = @transform_1, window_bounds = array<i64: 128, 128>}, {pipeline_mode = #tpu.pipeline_mode<synchronous>, transform_indices = @transform_2, window_bounds = array<i64: 128, 128>}, {pipeline_mode = #tpu.pipeline_mode<synchronous>, transform_indices = @transform_3, window_bounds = array<i64: 128, 128>}, {pipeline_mode = #tpu.pipeline_mode<synchronous>, transform_indices = @transform_4, window_bounds = array<i64: 128, 128>}]} {
    %c0 = arith.constant 0 : index
    %c0_0 = arith.constant 0 : index
    %0 = vector.load %arg1[%c0, %c0_0] : memref<128x128xbf16, #tpu.memory_space<vmem>>, vector<128x128xbf16>
    %1 = arith.extf %0 : vector<128x128xbf16> to vector<128x128xf32>
    %2 = tpu.transpose %1, [1, 0] : vector<128x128xf32> -> vector<128x128xf32>
    %c0_1 = arith.constant 0 : index
    %c0_2 = arith.constant 0 : index
    %3 = vector.load %arg2[%c0_1, %c0_2] : memref<128x128xf32, #tpu.memory_space<vmem>>, vector<128x128xf32>
    %c0_3 = arith.constant 0 : index
    %c0_4 = arith.constant 0 : index
    %4 = vector.load %arg3[%c0_3, %c0_4] : memref<128x128xf32, #tpu.memory_space<vmem>>, vector<128x128xf32>
    %cst = arith.constant dense<0.000000e+00> : vector<128xf32>
    %5 = vector.multi_reduction <add>, %1, %cst [1] : vector<128x128xf32> to vector<128xf32>
    %6 = vector.shape_cast %5 : vector<128xf32> to vector<128x1xf32>
    %cst_5 = arith.constant dense<0.000000e+00> : vector<128xf32>
    %7 = vector.multi_reduction <add>, %2, %cst_5 [1] : vector<128x128xf32> to vector<128xf32>
    %8 = vector.shape_cast %7 : vector<128xf32> to vector<128x1xf32>
    %cst_6 = arith.constant 0.000000e+00 : f32
    %9 = vector.broadcast %cst_6 : f32 to vector<128x1xf32>
    %10 = arith.cmpf ogt, %6, %9 : vector<128x1xf32>
    %cst_7 = arith.constant 1.000000e+00 : f32
    %11 = vector.broadcast %cst_7 : f32 to vector<128x1xf32>
    %12 = arith.divf %11, %6 : vector<128x1xf32>
    %cst_8 = arith.constant 0.000000e+00 : f32
    %13 = vector.broadcast %cst_8 : f32 to vector<128x1xf32>
    %14 = arith.select %10, %12, %13 : vector<128x1xi1>, vector<128x1xf32>
    %cst_9 = arith.constant 0.000000e+00 : f32
    %15 = vector.broadcast %cst_9 : f32 to vector<128x1xf32>
    %16 = arith.cmpf ogt, %8, %15 : vector<128x1xf32>
    %cst_10 = arith.constant 1.000000e+00 : f32
    %17 = vector.broadcast %cst_10 : f32 to vector<128x1xf32>
    %18 = arith.divf %17, %8 : vector<128x1xf32>
    %cst_11 = arith.constant 0.000000e+00 : f32
    %19 = vector.broadcast %cst_11 : f32 to vector<128x1xf32>
    %20 = arith.select %16, %18, %19 : vector<128x1xi1>, vector<128x1xf32>
    %cst_12 = arith.constant dense<0.000000e+00> : vector<128x128xf32>
    %21 = tpu.matmul %1, %4, %cst_12 {dimension_numbers = #tpu.dot_dimension_numbers<[1], [0], [0], [1], [0, 0, 1, 1], [], []>} : vector<128x128xf32>, vector<128x128xf32>, vector<128x128xf32> -> vector<128x128xf32>
    %22 = vector.broadcast %14 : vector<128x1xf32> to vector<128x128xf32>
    %23 = arith.mulf %21, %22 : vector<128x128xf32>
    %cst_13 = arith.constant dense<0.000000e+00> : vector<128x128xf32>
    %24 = tpu.matmul %2, %3, %cst_13 {dimension_numbers = #tpu.dot_dimension_numbers<[1], [0], [0], [1], [0, 0, 1, 1], [], []>} : vector<128x128xf32>, vector<128x128xf32>, vector<128x128xf32> -> vector<128x128xf32>
    %25 = vector.broadcast %20 : vector<128x1xf32> to vector<128x128xf32>
    %26 = arith.mulf %24, %25 : vector<128x128xf32>
    %cst_14 = arith.constant dense<0.000000e+00> : vector<128x128xf32>
    %27 = tpu.matmul %1, %26, %cst_14 {dimension_numbers = #tpu.dot_dimension_numbers<[1], [0], [0], [1], [0, 0, 1, 1], [], []>} : vector<128x128xf32>, vector<128x128xf32>, vector<128x128xf32> -> vector<128x128xf32>
    %28 = vector.broadcast %14 : vector<128x1xf32> to vector<128x128xf32>
    %29 = arith.mulf %27, %28 : vector<128x128xf32>
    %cst_15 = arith.constant dense<0.000000e+00> : vector<128x128xf32>
    %30 = tpu.matmul %2, %23, %cst_15 {dimension_numbers = #tpu.dot_dimension_numbers<[1], [0], [0], [1], [0, 0, 1, 1], [], []>} : vector<128x128xf32>, vector<128x128xf32>, vector<128x128xf32> -> vector<128x128xf32>
    %31 = vector.broadcast %20 : vector<128x1xf32> to vector<128x128xf32>
    %32 = arith.mulf %30, %31 : vector<128x128xf32>
    %33 = arith.addf %3, %23 : vector<128x128xf32>
    %34 = arith.addf %33, %29 : vector<128x128xf32>
    %cst_16 = arith.constant 3.000000e+00 : f32
    %35 = vector.broadcast %cst_16 : f32 to vector<128x128xf32>
    %36 = arith.divf %34, %35 : vector<128x128xf32>
    %c0_17 = arith.constant 0 : index
    %c0_18 = arith.constant 0 : index
    %37 = vector.load %arg4[%c0_17, %c0_18] : memref<128x128xf32, #tpu.memory_space<vmem>>, vector<128x128xf32>
    tpu.vector_store %arg4[%c0_17, %c0_18], %36 {strides = array<i32>} : memref<128x128xf32, #tpu.memory_space<vmem>>, vector<128x128xf32>,
    %38 = arith.addf %4, %26 : vector<128x128xf32>
    %39 = arith.addf %38, %32 : vector<128x128xf32>
    %cst_19 = arith.constant 3.000000e+00 : f32
    %40 = vector.broadcast %cst_19 : f32 to vector<128x128xf32>
    %41 = arith.divf %39, %40 : vector<128x128xf32>
    %c0_20 = arith.constant 0 : index
    %c0_21 = arith.constant 0 : index
    %42 = vector.load %arg5[%c0_20, %c0_21] : memref<128x128xf32, #tpu.memory_space<vmem>>, vector<128x128xf32>
    tpu.vector_store %arg5[%c0_20, %c0_21], %41 {strides = array<i32>} : memref<128x128xf32, #tpu.memory_space<vmem>>, vector<128x128xf32>,
    return
  }
  func.func @transform_0(%arg0: i32) -> (i32, i32) {
    %c0_i32 = arith.constant 0 : i32
    %c0_i32_0 = arith.constant 0 : i32
    %c0_i32_1 = arith.constant 0 : i32
    return %c0_i32, %c0_i32_0 : i32, i32
  }
  func.func @transform_1(%arg0: i32) -> (i32, i32) {
    %c0_i32 = arith.constant 0 : i32
    %c0_i32_0 = arith.constant 0 : i32
    %c0_i32_1 = arith.constant 0 : i32
    return %c0_i32, %c0_i32_0 : i32, i32
  }
  func.func @transform_2(%arg0: i32) -> (i32, i32) {
    %c0_i32 = arith.constant 0 : i32
    %c0_i32_0 = arith.constant 0 : i32
    %c0_i32_1 = arith.constant 0 : i32
    return %c0_i32, %c0_i32_0 : i32, i32
  }
  func.func @transform_3(%arg0: i32) -> (i32, i32) {
    %c0_i32 = arith.constant 0 : i32
    %c0_i32_0 = arith.constant 0 : i32
    %c0_i32_1 = arith.constant 0 : i32
    return %c0_i32, %c0_i32_0 : i32, i32
  }
  func.func @transform_4(%arg0: i32) -> (i32, i32) {
    %c0_i32 = arith.constant 0 : i32
    %c0_i32_0 = arith.constant 0 : i32
    %c0_i32_1 = arith.constant 0 : i32
    return %c0_i32, %c0_i32_0 : i32, i32
  }
}

</mosaic_0001>

<llo_original>
// kernel: two_layer_lightgcn.1
$region0: #{two_layer_lightgcn.1}
  #allocation0 [shape = 'u32[]', space=smem, size = 0x4, offset = 0x4, fixed_abs, tag = 'smem constant byte address 0x4 - core index']
  #allocation1 [shape = 'u32[144,128]{1,0:T(1,128)}', space=vmem, size = 0x12000, scoped, tag = 'internal scratch']
  %s0 = inlined_call_operand.vmem [shape: bf16[128,128], index: 0, kind: input, shape index: {}]
  %s1 = inlined_call_operand.vmem [shape: f32[128,128], index: 1, kind: input, shape index: {}]
  %s2 = inlined_call_operand.vmem [shape: f32[128,128], index: 2, kind: input, shape index: {}]
  %s3 = inlined_call_operand.vmem [shape: f32[128,128], index: 3, kind: output, shape index: {0}]
  %s4 = inlined_call_operand.vmem [shape: f32[128,128], index: 4, kind: output, shape index: {1}]
  %5 = xla_tuple %s3, %s4
  %s6 = sld [smem:[#allocation0]]
  $region30: #{two_layer_lightgcn.1} parent=0
    _
  %s8 = ssub.s32 1, %s6
  %s9 = scalar_select 0, %s8, %s6
  // Predicated region
  $region2: #{two_layer_lightgcn.1} parent=0 // pred_check
    _
  $region3: #{two_layer_lightgcn.1} parent=0 // pred_check_branch
    %11 = sbr.rel (0) target = $region5
  $region4: #{two_layer_lightgcn.1} parent=0 // pred_region
    _
  $region5: #{two_layer_lightgcn.1} parent=0 // pred_fallthru
    _
  // Predicated region
  $region6: #{two_layer_lightgcn.1} parent=0 // pred_check
    _
  $region7: #{two_layer_lightgcn.1} parent=0 // pred_check_branch
    %13 = sbr.rel (0) target = $region9
  $region8: #{two_layer_lightgcn.1} parent=0 // pred_region
    _
  $region9: #{two_layer_lightgcn.1} parent=0 // pred_fallthru
    _
  // Predicated region
  $region10: #{two_layer_lightgcn.1} parent=0 // pred_check
    _
  $region11: #{two_layer_lightgcn.1} parent=0 // pred_check_branch
    %15 = sbr.rel (0) target = $region13
  $region12: #{two_layer_lightgcn.1} parent=0 // pred_region
    _
  $region13: #{two_layer_lightgcn.1} parent=0 // pred_fallthru
    _
  %v16 = vld [vmem:[%s0] sm:$0xf]
  %v17 = vld [vmem:[%s0 + $0x4] sm:$0xf]
  %v18 = vld [vmem:[%s0 + $0x8] sm:$0xf]
  %v19 = vld [vmem:[%s0 + $0xc] sm:$0xf]
  %v20 = vld [vmem:[%s0 + $0x10] sm:$0xf]
  %v21 = vld [vmem:[%s0 + $0x14] sm:$0xf]
  %v22 = vld [vmem:[%s0 + $0x18] sm:$0xf]
  %v23 = vld [vmem:[%s0 + $0x1c] sm:$0xf]
  %v24 = vld [vmem:[%s0 + $0x20] sm:$0xf]
  %v25 = vld [vmem:[%s0 + $0x24] sm:$0xf]
  %v26 = vld [vmem:[%s0 + $0x28] sm:$0xf]
  %v27 = vld [vmem:[%s0 + $0x2c] sm:$0xf]
  %v28 = vld [vmem:[%s0 + $0x30] sm:$0xf]
  %v29 = vld [vmem:[%s0 + $0x34] sm:$0xf]
  %v30 = vld [vmem:[%s0 + $0x38] sm:$0xf]
  %v31 = vld [vmem:[%s0 + $0x3c] sm:$0xf]
  %v32 = vunpack.c.l.bf16 %v16
  %v33 = vunpack.c.l.bf16 %v17
  %v34 = vunpack.c.l.bf16 %v18
  %v35 = vunpack.c.l.bf16 %v19
  %v36 = vunpack.c.l.bf16 %v20
  %v37 = vunpack.c.l.bf16 %v21
  %v38 = vunpack.c.l.bf16 %v22
  %v39 = vunpack.c.l.bf16 %v23
  %v40 = vunpack.c.l.bf16 %v24
  %v41 = vunpack.c.l.bf16 %v25
  %v42 = vunpack.c.l.bf16 %v26
  %v43 = vunpack.c.l.bf16 %v27
  %v44 = vunpack.c.l.bf16 %v28
  %v45 = vunpack.c.l.bf16 %v29
  %v46 = vunpack.c.l.bf16 %v30
  %v47 = vunpack.c.l.bf16 %v31
  %48 = vxpose.xlu0.b32.start [1/16] %v32, 128
  %49 = vxpose.xlu0.b32.cont [2/16] %v33, 128
  %50 = vxpose.xlu0.b32.cont [3/16] %v34, 128
  %51 = vxpose.xlu0.b32.cont [4/16] %v35, 128
  %52 = vxpose.xlu0.b32.cont [5/16] %v36, 128
  %53 = vxpose.xlu0.b32.cont [6/16] %v37, 128
  %54 = vxpose.xlu0.b32.cont [7/16] %v38, 128
  %55 = vxpose.xlu0.b32.cont [8/16] %v39, 128
  %56 = vxpose.xlu0.b32.cont [9/16] %v40, 128
  %57 = vxpose.xlu0.b32.cont [10/16] %v41, 128
  %58 = vxpose.xlu0.b32.cont [11/16] %v42, 128
  %59 = vxpose.xlu0.b32.cont [12/16] %v43, 128
  %60 = vxpose.xlu0.b32.cont [13/16] %v44, 128
  %61 = vxpose.xlu0.b32.cont [14/16] %v45, 128
  %62 = vxpose.xlu0.b32.cont [15/16] %v46, 128
  %63 = vxpose.xlu0.b32.end [16/16] %v47, 128
  %v64 = vpop.trf.xlu0
  %v65 = vpop.trf.xlu0
  %v66 = vpop.trf.xlu0
  %v67 = vpop.trf.xlu0
  %v68 = vpop.trf.xlu0
  %v69 = vpop.trf.xlu0
  %v70 = vpop.trf.xlu0
  %v71 = vpop.trf.xlu0
  %v72 = vpop.trf.xlu0
  %v73 = vpop.trf.xlu0
  %v74 = vpop.trf.xlu0
  %v75 = vpop.trf.xlu0
  %v76 = vpop.trf.xlu0
  %v77 = vpop.trf.xlu0
  %v78 = vpop.trf.xlu0
  %v79 = vpop.trf.xlu0
  %v80 = vld [vmem:[%s1] sm:$0xff]
  %v81 = vld [vmem:[%s1 + $0x8] sm:$0xff]
  %v82 = vld [vmem:[%s1 + $0x10] sm:$0xff]
  %v83 = vld [vmem:[%s1 + $0x18] sm:$0xff]
  %v84 = vld [vmem:[%s1 + $0x20] sm:$0xff]
  %v85 = vld [vmem:[%s1 + $0x28] sm:$0xff]
  %v86 = vld [vmem:[%s1 + $0x30] sm:$0xff]
  %v87 = vld [vmem:[%s1 + $0x38] sm:$0xff]
  %v88 = vld [vmem:[%s1 + $0x40] sm:$0xff]
  %v89 = vld [vmem:[%s1 + $0x48] sm:$0xff]
  %v90 = vld [vmem:[%s1 + $0x50] sm:$0xff]
  %v91 = vld [vmem:[%s1 + $0x58] sm:$0xff]
  %v92 = vld [vmem:[%s1 + $0x60] sm:$0xff]
  %v93 = vld [vmem:[%s1 + $0x68] sm:$0xff]
  %v94 = vld [vmem:[%s1 + $0x70] sm:$0xff]
  %v95 = vld [vmem:[%s1 + $0x78] sm:$0xff]
  %v96 = vld [vmem:[%s2] sm:$0xff]
  %v97 = vld [vmem:[%s2 + $0x8] sm:$0xff]
  %v98 = vld [vmem:[%s2 + $0x10] sm:$0xff]
  %v99 = vld [vmem:[%s2 + $0x18] sm:$0xff]
  %v100 = vld [vmem:[%s2 + $0x20] sm:$0xff]
  %v101 = vld [vmem:[%s2 + $0x28] sm:$0xff]
  %v102 = vld [vmem:[%s2 + $0x30] sm:$0xff]
  %v103 = vld [vmem:[%s2 + $0x38] sm:$0xff]
  %v104 = vld [vmem:[%s2 + $0x40] sm:$0xff]
  %v105 = vld [vmem:[%s2 + $0x48] sm:$0xff]
  %v106 = vld [vmem:[%s2 + $0x50] sm:$0xff]
  %v107 = vld [vmem:[%s2 + $0x58] sm:$0xff]
  %v108 = vld [vmem:[%s2 + $0x60] sm:$0xff]
  %v109 = vld [vmem:[%s2 + $0x68] sm:$0xff]
  %v110 = vld [vmem:[%s2 + $0x70] sm:$0xff]
  %v111 = vld [vmem:[%s2 + $0x78] sm:$0xff]
  %112 = vadd.xlane.f32.xlu0 %v32
  %v113 = vpop.xlane.xlu0 %112
  %114 = vadd.xlane.f32.xlu0 %v33
  %v115 = vpop.xlane.xlu0 %114
  %116 = vadd.xlane.f32.xlu0 %v34
  %v117 = vpop.xlane.xlu0 %116
  %118 = vadd.xlane.f32.xlu0 %v35
  %v119 = vpop.xlane.xlu0 %118
  %120 = vadd.xlane.f32.xlu0 %v36
  %v121 = vpop.xlane.xlu0 %120
  %122 = vadd.xlane.f32.xlu0 %v37
  %v123 = vpop.xlane.xlu0 %122
  %124 = vadd.xlane.f32.xlu0 %v38
  %v125 = vpop.xlane.xlu0 %124
  %126 = vadd.xlane.f32.xlu0 %v39
  %v127 = vpop.xlane.xlu0 %126
  %128 = vadd.xlane.f32.xlu0 %v40
  %v129 = vpop.xlane.xlu0 %128
  %130 = vadd.xlane.f32.xlu0 %v41
  %v131 = vpop.xlane.xlu0 %130
  %132 = vadd.xlane.f32.xlu0 %v42
  %v133 = vpop.xlane.xlu0 %132
  %134 = vadd.xlane.f32.xlu0 %v43
  %v135 = vpop.xlane.xlu0 %134
  %136 = vadd.xlane.f32.xlu0 %v44
  %v137 = vpop.xlane.xlu0 %136
  %138 = vadd.xlane.f32.xlu0 %v45
  %v139 = vpop.xlane.xlu0 %138
  %140 = vadd.xlane.f32.xlu0 %v46
  %v141 = vpop.xlane.xlu0 %140
  %142 = vadd.xlane.f32.xlu0 %v47
  %v143 = vpop.xlane.xlu0 %142
  %144 = vadd.xlane.f32.xlu0 %v64
  %v145 = vpop.xlane.xlu0 %144
  %146 = vadd.xlane.f32.xlu0 %v65
  %v147 = vpop.xlane.xlu0 %146
  %148 = vadd.xlane.f32.xlu0 %v66
  %v149 = vpop.xlane.xlu0 %148
  %150 = vadd.xlane.f32.xlu0 %v67
  %v151 = vpop.xlane.xlu0 %150
  %152 = vadd.xlane.f32.xlu0 %v68
  %v153 = vpop.xlane.xlu0 %152
  %154 = vadd.xlane.f32.xlu0 %v69
  %v155 = vpop.xlane.xlu0 %154
  %156 = vadd.xlane.f32.xlu0 %v70
  %v157 = vpop.xlane.xlu0 %156
  %158 = vadd.xlane.f32.xlu0 %v71
  %v159 = vpop.xlane.xlu0 %158
  %160 = vadd.xlane.f32.xlu0 %v72
  %v161 = vpop.xlane.xlu0 %160
  %162 = vadd.xlane.f32.xlu0 %v73
  %v163 = vpop.xlane.xlu0 %162
  %164 = vadd.xlane.f32.xlu0 %v74
  %v165 = vpop.xlane.xlu0 %164
  %166 = vadd.xlane.f32.xlu0 %v75
  %v167 = vpop.xlane.xlu0 %166
  %168 = vadd.xlane.f32.xlu0 %v76
  %v169 = vpop.xlane.xlu0 %168
  %170 = vadd.xlane.f32.xlu0 %v77
  %v171 = vpop.xlane.xlu0 %170
  %172 = vadd.xlane.f32.xlu0 %v78
  %v173 = vpop.xlane.xlu0 %172
  %174 = vadd.xlane.f32.xlu0 %v79
  %v175 = vpop.xlane.xlu0 %174
  %vm176 = vcmp.gt.f32.partialorder %v113, 0.0
  %vm177 = vcmp.gt.f32.partialorder %v115, 0.0
  %vm178 = vcmp.gt.f32.partialorder %v117, 0.0
  %vm179 = vcmp.gt.f32.partialorder %v119, 0.0
  %vm180 = vcmp.gt.f32.partialorder %v121, 0.0
  %vm181 = vcmp.gt.f32.partialorder %v123, 0.0
  %vm182 = vcmp.gt.f32.partialorder %v125, 0.0
  %vm183 = vcmp.gt.f32.partialorder %v127, 0.0
  %vm184 = vcmp.gt.f32.partialorder %v129, 0.0
  %vm185 = vcmp.gt.f32.partialorder %v131, 0.0
  %vm186 = vcmp.gt.f32.partialorder %v133, 0.0
  %vm187 = vcmp.gt.f32.partialorder %v135, 0.0
  %vm188 = vcmp.gt.f32.partialorder %v137, 0.0
  %vm189 = vcmp.gt.f32.partialorder %v139, 0.0
  %vm190 = vcmp.gt.f32.partialorder %v141, 0.0
  %vm191 = vcmp.gt.f32.partialorder %v143, 0.0
  %v192 = vrcp.pop %v113
  %v193 = vmul.f32 1.0, %v192
  %v194 = vrcp.pop %v115
  %v195 = vmul.f32 1.0, %v194
  %v196 = vrcp.pop %v117
  %v197 = vmul.f32 1.0, %v196
  %v198 = vrcp.pop %v119
  %v199 = vmul.f32 1.0, %v198
  %v200 = vrcp.pop %v121
  %v201 = vmul.f32 1.0, %v200
  %v202 = vrcp.pop %v123
  %v203 = vmul.f32 1.0, %v202
  %v204 = vrcp.pop %v125
  %v205 = vmul.f32 1.0, %v204
  %v206 = vrcp.pop %v127
  %v207 = vmul.f32 1.0, %v206
  %v208 = vrcp.pop %v129
  %v209 = vmul.f32 1.0, %v208
  %v210 = vrcp.pop %v131
  %v211 = vmul.f32 1.0, %v210
  %v212 = vrcp.pop %v133
  %v213 = vmul.f32 1.0, %v212
  %v214 = vrcp.pop %v135
  %v215 = vmul.f32 1.0, %v214
  %v216 = vrcp.pop %v137
  %v217 = vmul.f32 1.0, %v216
  %v218 = vrcp.pop %v139
  %v219 = vmul.f32 1.0, %v218
  %v220 = vrcp.pop %v141
  %v221 = vmul.f32 1.0, %v220
  %v222 = vrcp.pop %v143
  %v223 = vmul.f32 1.0, %v222
  %v224 = vsel %vm176, %v193, 0.0
  %v225 = vsel %vm177, %v195, 0.0
  %v226 = vsel %vm178, %v197, 0.0
  %v227 = vsel %vm179, %v199, 0.0
  %v228 = vsel %vm180, %v201, 0.0
  %v229 = vsel %vm181, %v203, 0.0
  %v230 = vsel %vm182, %v205, 0.0
  %v231 = vsel %vm183, %v207, 0.0
  %v232 = vsel %vm184, %v209, 0.0
  %v233 = vsel %vm185, %v211, 0.0
  %v234 = vsel %vm186, %v213, 0.0
  %v235 = vsel %vm187, %v215, 0.0
  %v236 = vsel %vm188, %v217, 0.0
  %v237 = vsel %vm189, %v219, 0.0
  %v238 = vsel %vm190, %v221, 0.0
  %v239 = vsel %vm191, %v223, 0.0
  %vm240 = vcmp.gt.f32.partialorder %v145, 0.0
  %vm241 = vcmp.gt.f32.partialorder %v147, 0.0
  %vm242 = vcmp.gt.f32.partialorder %v149, 0.0
  %vm243 = vcmp.gt.f32.partialorder %v151, 0.0
  %vm244 = vcmp.gt.f32.partialorder %v153, 0.0
  %vm245 = vcmp.gt.f32.partialorder %v155, 0.0
  %vm246 = vcmp.gt.f32.partialorder %v157, 0.0
  %vm247 = vcmp.gt.f32.partialorder %v159, 0.0
  %vm248 = vcmp.gt.f32.partialorder %v161, 0.0
  %vm249 = vcmp.gt.f32.partialorder %v163, 0.0
  %vm250 = vcmp.gt.f32.partialorder %v165, 0.0
  %vm251 = vcmp.gt.f32.partialorder %v167, 0.0
  %vm252 = vcmp.gt.f32.partialorder %v169, 0.0
  %vm253 = vcmp.gt.f32.partialorder %v171, 0.0
  %vm254 = vcmp.gt.f32.partialorder %v173, 0.0
  %vm255 = vcmp.gt.f32.partialorder %v175, 0.0
  %v256 = vrcp.pop %v145
  %v257 = vmul.f32 1.0, %v256
  %v258 = vrcp.pop %v147
  %v259 = vmul.f32 1.0, %v258
  %v260 = vrcp.pop %v149
  %v261 = vmul.f32 1.0, %v260
  %v262 = vrcp.pop %v151
  %v263 = vmul.f32 1.0, %v262
  %v264 = vrcp.pop %v153
  %v265 = vmul.f32 1.0, %v264
  %v266 = vrcp.pop %v155
  %v267 = vmul.f32 1.0, %v266
  %v268 = vrcp.pop %v157
  %v269 = vmul.f32 1.0, %v268
  %v270 = vrcp.pop %v159
  %v271 = vmul.f32 1.0, %v270
  %v272 = vrcp.pop %v161
  %v273 = vmul.f32 1.0, %v272
  %v274 = vrcp.pop %v163
  %v275 = vmul.f32 1.0, %v274
  %v276 = vrcp.pop %v165
  %v277 = vmul.f32 1.0, %v276
  %v278 = vrcp.pop %v167
  %v279 = vmul.f32 1.0, %v278
  %v280 = vrcp.pop %v169
  %v281 = vmul.f32 1.0, %v280
  %v282 = vrcp.pop %v171
  %v283 = vmul.f32 1.0, %v282
  %v284 = vrcp.pop %v173
  %v285 = vmul.f32 1.0, %v284
  %v286 = vrcp.pop %v175
  %v287 = vmul.f32 1.0, %v286
  %v288 = vsel %vm240, %v257, 0.0
  %v289 = vsel %vm241, %v259, 0.0
  %v290 = vsel %vm242, %v261, 0.0
  %v291 = vsel %vm243, %v263, 0.0
  %v292 = vsel %vm244, %v265, 0.0
  %v293 = vsel %vm245, %v267, 0.0
  %v294 = vsel %vm246, %v269, 0.0
  %v295 = vsel %vm247, %v271, 0.0
  %v296 = vsel %vm248, %v273, 0.0
  %v297 = vsel %vm249, %v275, 0.0
  %v298 = vsel %vm250, %v277, 0.0
  %v299 = vsel %vm251, %v279, 0.0
  %v300 = vsel %vm252, %v281, 0.0
  %v301 = vsel %vm253, %v283, 0.0
  %v302 = vsel %vm254, %v285, 0.0
  %v303 = vsel %vm255, %v287, 0.0
  %304 = vmatprep.subr.mxu0 0.0
  %305 = vmatpush1.msra.mxu0 %v96
  %306 = vmatprep.subr.mxu0 0.0
  %307 = vmatpush1.msra.mxu0 %v97
  %308 = vmatprep.subr.mxu0 0.0
  %309 = vmatpush1.msra.mxu0 %v98
  %310 = vmatprep.subr.mxu0 0.0
  %311 = vmatpush1.msra.mxu0 %v99
  %312 = vmatprep.subr.mxu0 0.0
  %313 = vmatpush1.msra.mxu0 %v100
  %314 = vmatprep.subr.mxu0 0.0
  %315 = vmatpush1.msra.mxu0 %v101
  %316 = vmatprep.subr.mxu0 0.0
  %317 = vmatpush1.msra.mxu0 %v102
  %318 = vmatprep.subr.mxu0 0.0
  %319 = vmatpush1.msra.mxu0 %v103
  %320 = vmatprep.subr.mxu0 0.0
  %321 = vmatpush1.msra.mxu0 %v104
  %322 = vmatprep.subr.mxu0 0.0
  %323 = vmatpush1.msra.mxu0 %v105
  %324 = vmatprep.subr.mxu0 0.0
  %325 = vmatpush1.msra.mxu0 %v106
  %326 = vmatprep.subr.mxu0 0.0
  %327 = vmatpush1.msra.mxu0 %v107
  %328 = vmatprep.subr.mxu0 0.0
  %329 = vmatpush1.msra.mxu0 %v108
  %330 = vmatprep.subr.mxu0 0.0
  %331 = vmatpush1.msra.mxu0 %v109
  %332 = vmatprep.subr.mxu0 0.0
  %333 = vmatpush1.msra.mxu0 %v110
  %334 = vmatprep.subr.mxu0 0.0
  %335 = vmatpush1.msra.mxu0 %v111
  %336 = vmatprep.subr.mxu0 0.0
  %337 = vmatpush1.msra.mxu0 0.0
  %338 = vmatprep.subr.mxu0 0.0
  %339 = vmatpush1.msra.mxu0 0.0
  %340 = vmatprep.subr.mxu0 0.0
  %341 = vmatpush1.msra.mxu0 0.0
  %342 = vmatprep.subr.mxu0 0.0
  %343 = vmatpush1.msra.mxu0 0.0
  %344 = vmatprep.subr.mxu0 0.0
  %345 = vmatpush1.msra.mxu0 0.0
  %346 = vmatprep.subr.mxu0 0.0
  %347 = vmatpush1.msra.mxu0 0.0
  %348 = vmatprep.subr.mxu0 0.0
  %349 = vmatpush1.msra.mxu0 0.0
  %350 = vmatprep.subr.mxu0 0.0
  %351 = vmatpush1.msra.mxu0 0.0
  %352 = vmatprep.subr.mxu0 0.0
  %353 = vmatpush1.msra.mxu0 0.0
  %354 = vmatprep.subr.mxu0 0.0
  %355 = vmatpush1.msra.mxu0 0.0
  %356 = vmatprep.subr.mxu0 0.0
  %357 = vmatpush1.msra.mxu0 0.0
  %358 = vmatprep.subr.mxu0 0.0
  %359 = vmatpush1.msra.mxu0 0.0
  %360 = vmatprep.subr.mxu0 0.0
  %361 = vmatpush1.msra.mxu0 0.0
  %362 = vmatprep.subr.mxu0 0.0
  %363 = vmatpush1.msra.mxu0 0.0
  %364 = vmatprep.subr.mxu0 0.0
  %365 = vmatpush1.msra.mxu0 0.0
  %366 = vmatprep.subr.mxu0 0.0
  %367 = vmatpush1.msra.mxu0 0.0
  %368 = vmatprep.mubr.f32.mxu0 0.0
  %369 = vmatmul.mubr.f32.gmra.mrb[0].mxu0 %v32
  %v370 = vpop.f32.mrb[0].mxu0
  %v371 = vadd.f32 0.0, %v370
  %v372 = vpop.f32.mrb[0].mxu0
  %373 = vmatprep.mubr.f32.mxu0 0.0
  %374 = vmatmul.mubr.f32.gmra.mrb[0].mxu0 %v33
  %v375 = vpop.f32.mrb[0].mxu0
  %v376 = vadd.f32 0.0, %v375
  %v377 = vpop.f32.mrb[0].mxu0
  %378 = vmatprep.mubr.f32.mxu0 0.0
  %379 = vmatmul.mubr.f32.gmra.mrb[0].mxu0 %v34
  %v380 = vpop.f32.mrb[0].mxu0
  %v381 = vadd.f32 0.0, %v380
  %v382 = vpop.f32.mrb[0].mxu0
  %383 = vmatprep.mubr.f32.mxu0 0.0
  %384 = vmatmul.mubr.f32.gmra.mrb[0].mxu0 %v35
  %v385 = vpop.f32.mrb[0].mxu0
  %v386 = vadd.f32 0.0, %v385
  %v387 = vpop.f32.mrb[0].mxu0
  %388 = vmatprep.mubr.f32.mxu0 0.0
  %389 = vmatmul.mubr.f32.gmra.mrb[0].mxu0 %v36
  %v390 = vpop.f32.mrb[0].mxu0
  %v391 = vadd.f32 0.0, %v390
  %v392 = vpop.f32.mrb[0].mxu0
  %393 = vmatprep.mubr.f32.mxu0 0.0
  %394 = vmatmul.mubr.f32.gmra.mrb[0].mxu0 %v37
  %v395 = vpop.f32.mrb[0].mxu0
  %v396 = vadd.f32 0.0, %v395
  %v397 = vpop.f32.mrb[0].mxu0
  %398 = vmatprep.mubr.f32.mxu0 0.0
  %399 = vmatmul.mubr.f32.gmra.mrb[0].mxu0 %v38
  %v400 = vpop.f32.mrb[0].mxu0
  %v401 = vadd.f32 0.0, %v400
  %v402 = vpop.f32.mrb[0].mxu0
  %403 = vmatprep.mubr.f32.mxu0 0.0
  %404 = vmatmul.mubr.f32.gmra.mrb[0].mxu0 %v39
  %v405 = vpop.f32.mrb[0].mxu0
  %v406 = vadd.f32 0.0, %v405
  %v407 = vpop.f32.mrb[0].mxu0
  %408 = vmatprep.mubr.f32.mxu0 0.0
  %409 = vmatmul.mubr.f32.gmra.mrb[0].mxu0 %v40
  %v410 = vpop.f32.mrb[0].mxu0
  %v411 = vadd.f32 0.0, %v410
  %v412 = vpop.f32.mrb[0].mxu0
  %413 = vmatprep.mubr.f32.mxu0 0.0
  %414 = vmatmul.mubr.f32.gmra.mrb[0].mxu0 %v41
  %v415 = vpop.f32.mrb[0].mxu0
  %v416 = vadd.f32 0.0, %v415
  %v417 = vpop.f32.mrb[0].mxu0
  %418 = vmatprep.mubr.f32.mxu0 0.0
  %419 = vmatmul.mubr.f32.gmra.mrb[0].mxu0 %v42
  %v420 = vpop.f32.mrb[0].mxu0
  %v421 = vadd.f32 0.0, %v420
  %v422 = vpop.f32.mrb[0].mxu0
  %423 = vmatprep.mubr.f32.mxu0 0.0
  %424 = vmatmul.mubr.f32.gmra.mrb[0].mxu0 %v43
  %v425 = vpop.f32.mrb[0].mxu0
  %v426 = vadd.f32 0.0, %v425
  %v427 = vpop.f32.mrb[0].mxu0
  %428 = vmatprep.mubr.f32.mxu0 0.0
  %429 = vmatmul.mubr.f32.gmra.mrb[0].mxu0 %v44
  %v430 = vpop.f32.mrb[0].mxu0
  %v431 = vadd.f32 0.0, %v430
  %v432 = vpop.f32.mrb[0].mxu0
  %433 = vmatprep.mubr.f32.mxu0 0.0
  %434 = vmatmul.mubr.f32.gmra.mrb[0].mxu0 %v45
  %v435 = vpop.f32.mrb[0].mxu0
  %v436 = vadd.f32 0.0, %v435
  %v437 = vpop.f32.mrb[0].mxu0
  %438 = vmatprep.mubr.f32.mxu0 0.0
  %439 = vmatmul.mubr.f32.gmra.mrb[0].mxu0 %v46
  %v440 = vpop.f32.mrb[0].mxu0
  %v441 = vadd.f32 0.0, %v440
  %v442 = vpop.f32.mrb[0].mxu0
  %443 = vmatprep.mubr.f32.mxu0 0.0
  %444 = vmatmul.mubr.f32.gmra.mrb[0].mxu0 %v47
  %v445 = vpop.f32.mrb[0].mxu0
  %v446 = vadd.f32 0.0, %v445
  %v447 = vpop.f32.mrb[0].mxu0
  %448 = vdwg.mxu0
  %v449 = vmul.f32 %v371, %v224
  %v450 = vmul.f32 %v376, %v225
  %v451 = vmul.f32 %v381, %v226
  %v452 = vmul.f32 %v386, %v227
  %v453 = vmul.f32 %v391, %v228
  %v454 = vmul.f32 %v396, %v229
  %v455 = vmul.f32 %v401, %v230
  %v456 = vmul.f32 %v406, %v231
  %v457 = vmul.f32 %v411, %v232
  %v458 = vmul.f32 %v416, %v233
  %v459 = vmul.f32 %v421, %v234
  %v460 = vmul.f32 %v426, %v235
  %v461 = vmul.f32 %v431, %v236
  %v462 = vmul.f32 %v436, %v237
  %v463 = vmul.f32 %v441, %v238
  %v464 = vmul.f32 %v446, %v239
  %465 = vmatprep.subr.mxu0 0.0
  %466 = vmatpush1.msra.mxu0 %v80
  %467 = vmatprep.subr.mxu0 0.0
  %468 = vmatpush1.msra.mxu0 %v81
  %469 = vmatprep.subr.mxu0 0.0
  %470 = vmatpush1.msra.mxu0 %v82
  %471 = vmatprep.subr.mxu0 0.0
  %472 = vmatpush1.msra.mxu0 %v83
  %473 = vmatprep.subr.mxu0 0.0
  %474 = vmatpush1.msra.mxu0 %v84
  %475 = vmatprep.subr.mxu0 0.0
  %476 = vmatpush1.msra.mxu0 %v85
  %477 = vmatprep.subr.mxu0 0.0
  %478 = vmatpush1.msra.mxu0 %v86
  %479 = vmatprep.subr.mxu0 0.0
  %480 = vmatpush1.msra.mxu0 %v87
  %481 = vmatprep.subr.mxu0 0.0
  %482 = vmatpush1.msra.mxu0 %v88
  %483 = vmatprep.subr.mxu0 0.0
  %484 = vmatpush1.msra.mxu0 %v89
  %485 = vmatprep.subr.mxu0 0.0
  %486 = vmatpush1.msra.mxu0 %v90
  %487 = vmatprep.subr.mxu0 0.0
  %488 = vmatpush1.msra.mxu0 %v91
  %489 = vmatprep.subr.mxu0 0.0
  %490 = vmatpush1.msra.mxu0 %v92
  %491 = vmatprep.subr.mxu0 0.0
  %492 = vmatpush1.msra.mxu0 %v93
  %493 = vmatprep.subr.mxu0 0.0
  %494 = vmatpush1.msra.mxu0 %v94
  %495 = vmatprep.subr.mxu0 0.0
  %496 = vmatpush1.msra.mxu0 %v95
  %497 = vmatprep.subr.mxu0 0.0
  %498 = vmatpush1.msra.mxu0 0.0
  %499 = vmatprep.subr.mxu0 0.0
  %500 = vmatpush1.msra.mxu0 0.0
  %501 = vmatprep.subr.mxu0 0.0
  %502 = vmatpush1.msra.mxu0 0.0
  %503 = vmatprep.subr.mxu0 0.0
  %504 = vmatpush1.msra.mxu0 0.0
  %505 = vmatprep.subr.mxu0 0.0
  %506 = vmatpush1.msra.mxu0 0.0
  %507 = vmatprep.subr.mxu0 0.0
  %508 = vmatpush1.msra.mxu0 0.0
  %509 = vmatprep.subr.mxu0 0.0
  %510 = vmatpush1.msra.mxu0 0.0
  %511 = vmatprep.subr.mxu0 0.0
  %512 = vmatpush1.msra.mxu0 0.0
  %513 = vmatprep.subr.mxu0 0.0
  %514 = vmatpush1.msra.mxu0 0.0
  %515 = vmatprep.subr.mxu0 0.0
  %516 = vmatpush1.msra.mxu0 0.0
  %517 = vmatprep.subr.mxu0 0.0
  %518 = vmatpush1.msra.mxu0 0.0
  %519 = vmatprep.subr.mxu0 0.0
  %520 = vmatpush1.msra.mxu0 0.0
  %521 = vmatprep.subr.mxu0 0.0
  %522 = vmatpush1.msra.mxu0 0.0
  %523 = vmatprep.subr.mxu0 0.0
  %524 = vmatpush1.msra.mxu0 0.0
  %525 = vmatprep.subr.mxu0 0.0
  %526 = vmatpush1.msra.mxu0 0.0
  %527 = vmatprep.subr.mxu0 0.0
  %528 = vmatpush1.msra.mxu0 0.0
  %529 = vmatprep.mubr.f32.mxu0 0.0
  %530 = vmatmul.mubr.f32.gmra.mrb[0].mxu0 %v64
  %v531 = vpop.f32.mrb[0].mxu0
  %v532 = vadd.f32 0.0, %v531
  %v533 = vpop.f32.mrb[0].mxu0
  %534 = vmatprep.mubr.f32.mxu0 0.0
  %535 = vmatmul.mubr.f32.gmra.mrb[0].mxu0 %v65
  %v536 = vpop.f32.mrb[0].mxu0
  %v537 = vadd.f32 0.0, %v536
  %v538 = vpop.f32.mrb[0].mxu0
  %539 = vmatprep.mubr.f32.mxu0 0.0
  %540 = vmatmul.mubr.f32.gmra.mrb[0].mxu0 %v66
  %v541 = vpop.f32.mrb[0].mxu0
  %v542 = vadd.f32 0.0, %v541
  %v543 = vpop.f32.mrb[0].mxu0
  %544 = vmatprep.mubr.f32.mxu0 0.0
  %545 = vmatmul.mubr.f32.gmra.mrb[0].mxu0 %v67
  %v546 = vpop.f32.mrb[0].mxu0
  %v547 = vadd.f32 0.0, %v546
  %v548 = vpop.f32.mrb[0].mxu0
  %549 = vmatprep.mubr.f32.mxu0 0.0
  %550 = vmatmul.mubr.f32.gmra.mrb[0].mxu0 %v68
  %v551 = vpop.f32.mrb[0].mxu0
  %v552 = vadd.f32 0.0, %v551
  %v553 = vpop.f32.mrb[0].mxu0
  %554 = vmatprep.mubr.f32.mxu0 0.0
  %555 = vmatmul.mubr.f32.gmra.mrb[0].mxu0 %v69
  %v556 = vpop.f32.mrb[0].mxu0
  %v557 = vadd.f32 0.0, %v556
  %v558 = vpop.f32.mrb[0].mxu0
  %559 = vmatprep.mubr.f32.mxu0 0.0
  %560 = vmatmul.mubr.f32.gmra.mrb[0].mxu0 %v70
  %v561 = vpop.f32.mrb[0].mxu0
  %v562 = vadd.f32 0.0, %v561
  %v563 = vpop.f32.mrb[0].mxu0
  %564 = vmatprep.mubr.f32.mxu0 0.0
  %565 = vmatmul.mubr.f32.gmra.mrb[0].mxu0 %v71
  %v566 = vpop.f32.mrb[0].mxu0
  %v567 = vadd.f32 0.0, %v566
  %v568 = vpop.f32.mrb[0].mxu0
  %569 = vmatprep.mubr.f32.mxu0 0.0
  %570 = vmatmul.mubr.f32.gmra.mrb[0].mxu0 %v72
  %v571 = vpop.f32.mrb[0].mxu0
  %v572 = vadd.f32 0.0, %v571
  %v573 = vpop.f32.mrb[0].mxu0
  %574 = vmatprep.mubr.f32.mxu0 0.0
  %575 = vmatmul.mubr.f32.gmra.mrb[0].mxu0 %v73
  %v576 = vpop.f32.mrb[0].mxu0
  %v577 = vadd.f32 0.0, %v576
  %v578 = vpop.f32.mrb[0].mxu0
  %579 = vmatprep.mubr.f32.mxu0 0.0
  %580 = vmatmul.mubr.f32.gmra.mrb[0].mxu0 %v74
  %v581 = vpop.f32.mrb[0].mxu0
  %v582 = vadd.f32 0.0, %v581
  %v583 = vpop.f32.mrb[0].mxu0
  %584 = vmatprep.mubr.f32.mxu0 0.0
  %585 = vmatmul.mubr.f32.gmra.mrb[0].mxu0 %v75
  %v586 = vpop.f32.mrb[0].mxu0
  %v587 = vadd.f32 0.0, %v586
  %v588 = vpop.f32.mrb[0].mxu0
  %589 = vmatprep.mubr.f32.mxu0 0.0
  %590 = vmatmul.mubr.f32.gmra.mrb[0].mxu0 %v76
  %v591 = vpop.f32.mrb[0].mxu0
  %v592 = vadd.f32 0.0, %v591
  %v593 = vpop.f32.mrb[0].mxu0
  %594 = vmatprep.mubr.f32.mxu0 0.0
  %595 = vmatmul.mubr.f32.gmra.mrb[0].mxu0 %v77
  %v596 = vpop.f32.mrb[0].mxu0
  %v597 = vadd.f32 0.0, %v596
  %v598 = vpop.f32.mrb[0].mxu0
  %599 = vmatprep.mubr.f32.mxu0 0.0
  %600 = vmatmul.mubr.f32.gmra.mrb[0].mxu0 %v78
  %v601 = vpop.f32.mrb[0].mxu0
  %v602 = vadd.f32 0.0, %v601
  %v603 = vpop.f32.mrb[0].mxu0
  %604 = vmatprep.mubr.f32.mxu0 0.0
  %605 = vmatmul.mubr.f32.gmra.mrb[0].mxu0 %v79
  %v606 = vpop.f32.mrb[0].mxu0
  %v607 = vadd.f32 0.0, %v606
  %v608 = vpop.f32.mrb[0].mxu0
  %609 = vdwg.mxu0
  %v610 = vmul.f32 %v532, %v288
  %v611 = vmul.f32 %v537, %v289
  %v612 = vmul.f32 %v542, %v290
  %v613 = vmul.f32 %v547, %v291
  %v614 = vmul.f32 %v552, %v292
  %v615 = vmul.f32 %v557, %v293
  %v616 = vmul.f32 %v562, %v294
  %v617 = vmul.f32 %v567, %v295
  %v618 = vmul.f32 %v572, %v296
  %v619 = vmul.f32 %v577, %v297
  %v620 = vmul.f32 %v582, %v298
  %v621 = vmul.f32 %v587, %v299
  %v622 = vmul.f32 %v592, %v300
  %v623 = vmul.f32 %v597, %v301
  %v624 = vmul.f32 %v602, %v302
  %v625 = vmul.f32 %v607, %v303
  %626 = vmatprep.subr.mxu0 0.0
  %627 = vmatpush1.msra.mxu0 %v610
  %628 = vmatprep.subr.mxu0 0.0
  %629 = vmatpush1.msra.mxu0 %v611
  %630 = vmatprep.subr.mxu0 0.0
  %631 = vmatpush1.msra.mxu0 %v612
  %632 = vmatprep.subr.mxu0 0.0
  %633 = vmatpush1.msra.mxu0 %v613
  %634 = vmatprep.subr.mxu0 0.0
  %635 = vmatpush1.msra.mxu0 %v614
  %636 = vmatprep.subr.mxu0 0.0
  %637 = vmatpush1.msra.mxu0 %v615
  %638 = vmatprep.subr.mxu0 0.0
  %639 = vmatpush1.msra.mxu0 %v616
  %640 = vmatprep.subr.mxu0 0.0
  %641 = vmatpush1.msra.mxu0 %v617
  %642 = vmatprep.subr.mxu0 0.0
  %643 = vmatpush1.msra.mxu0 %v618
  %644 = vmatprep.subr.mxu0 0.0
  %645 = vmatpush1.msra.mxu0 %v619
  %646 = vmatprep.subr.mxu0 0.0
  %647 = vmatpush1.msra.mxu0 %v620
  %648 = vmatprep.subr.mxu0 0.0
  %649 = vmatpush1.msra.mxu0 %v621
  %650 = vmatprep.subr.mxu0 0.0
  %651 = vmatpush1.msra.mxu0 %v622
  %652 = vmatprep.subr.mxu0 0.0
  %653 = vmatpush1.msra.mxu0 %v623
  %654 = vmatprep.subr.mxu0 0.0
  %655 = vmatpush1.msra.mxu0 %v624
  %656 = vmatprep.subr.mxu0 0.0
  %657 = vmatpush1.msra.mxu0 %v625
  %658 = vmatprep.subr.mxu0 0.0
  %659 = vmatpush1.msra.mxu0 0.0
  %660 = vmatprep.subr.mxu0 0.0
  %661 = vmatpush1.msra.mxu0 0.0
  %662 = vmatprep.subr.mxu0 0.0
  %663 = vmatpush1.msra.mxu0 0.0
  %664 = vmatprep.subr.mxu0 0.0
  %665 = vmatpush1.msra.mxu0 0.0
  %666 = vmatprep.subr.mxu0 0.0
  %667 = vmatpush1.msra.mxu0 0.0
  %668 = vmatprep.subr.mxu0 0.0
  %669 = vmatpush1.msra.mxu0 0.0
  %670 = vmatprep.subr.mxu0 0.0
  %671 = vmatpush1.msra.mxu0 0.0
  %672 = vmatprep.subr.mxu0 0.0
  %673 = vmatpush1.msra.mxu0 0.0
  %674 = vmatprep.subr.mxu0 0.0
  %675 = vmatpush1.msra.mxu0 0.0
  %676 = vmatprep.subr.mxu0 0.0
  %677 = vmatpush1.msra.mxu0 0.0
  %678 = vmatprep.subr.mxu0 0.0
  %679 = vmatpush1.msra.mxu0 0.0
  %680 = vmatprep.subr.mxu0 0.0
  %681 = vmatpush1.msra.mxu0 0.0
  %682 = vmatprep.subr.mxu0 0.0
  %683 = vmatpush1.msra.mxu0 0.0
  %684 = vmatprep.subr.mxu0 0.0
  %685 = vmatpush1.msra.mxu0 0.0
  %686 = vmatprep.subr.mxu0 0.0
  %687 = vmatpush1.msra.mxu0 0.0
  %688 = vmatprep.subr.mxu0 0.0
  %689 = vmatpush1.msra.mxu0 0.0
  %690 = vmatprep.mubr.f32.mxu0 0.0
  %691 = vmatmul.mubr.f32.gmra.mrb[0].mxu0 %v32
  %v692 = vpop.f32.mrb[0].mxu0
  %v693 = vadd.f32 0.0, %v692
  %v694 = vpop.f32.mrb[0].mxu0
  %695 = vmatprep.mubr.f32.mxu0 0.0
  %696 = vmatmul.mubr.f32.gmra.mrb[0].mxu0 %v33
  %v697 = vpop.f32.mrb[0].mxu0
  %v698 = vadd.f32 0.0, %v697
  %v699 = vpop.f32.mrb[0].mxu0
  %700 = vmatprep.mubr.f32.mxu0 0.0
  %701 = vmatmul.mubr.f32.gmra.mrb[0].mxu0 %v34
  %v702 = vpop.f32.mrb[0].mxu0
  %v703 = vadd.f32 0.0, %v702
  %v704 = vpop.f32.mrb[0].mxu0
  %705 = vmatprep.mubr.f32.mxu0 0.0
  %706 = vmatmul.mubr.f32.gmra.mrb[0].mxu0 %v35
  %v707 = vpop.f32.mrb[0].mxu0
  %v708 = vadd.f32 0.0, %v707
  %v709 = vpop.f32.mrb[0].mxu0
  %710 = vmatprep.mubr.f32.mxu0 0.0
  %711 = vmatmul.mubr.f32.gmra.mrb[0].mxu0 %v36
  %v712 = vpop.f32.mrb[0].mxu0
  %v713 = vadd.f32 0.0, %v712
  %v714 = vpop.f32.mrb[0].mxu0
  %715 = vmatprep.mubr.f32.mxu0 0.0
  %716 = vmatmul.mubr.f32.gmra.mrb[0].mxu0 %v37
  %v717 = vpop.f32.mrb[0].mxu0
  %v718 = vadd.f32 0.0, %v717
  %v719 = vpop.f32.mrb[0].mxu0
  %720 = vmatprep.mubr.f32.mxu0 0.0
  %721 = vmatmul.mubr.f32.gmra.mrb[0].mxu0 %v38
  %v722 = vpop.f32.mrb[0].mxu0
  %v723 = vadd.f32 0.0, %v722
  %v724 = vpop.f32.mrb[0].mxu0
  %725 = vmatprep.mubr.f32.mxu0 0.0
  %726 = vmatmul.mubr.f32.gmra.mrb[0].mxu0 %v39
  %v727 = vpop.f32.mrb[0].mxu0
  %v728 = vadd.f32 0.0, %v727
  %v729 = vpop.f32.mrb[0].mxu0
  %730 = vmatprep.mubr.f32.mxu0 0.0
  %731 = vmatmul.mubr.f32.gmra.mrb[0].mxu0 %v40
  %v732 = vpop.f32.mrb[0].mxu0
  %v733 = vadd.f32 0.0, %v732
  %v734 = vpop.f32.mrb[0].mxu0
  %735 = vmatprep.mubr.f32.mxu0 0.0
  %736 = vmatmul.mubr.f32.gmra.mrb[0].mxu0 %v41
  %v737 = vpop.f32.mrb[0].mxu0
  %v738 = vadd.f32 0.0, %v737
  %v739 = vpop.f32.mrb[0].mxu0
  %740 = vmatprep.mubr.f32.mxu0 0.0
  %741 = vmatmul.mubr.f32.gmra.mrb[0].mxu0 %v42
  %v742 = vpop.f32.mrb[0].mxu0
  %v743 = vadd.f32 0.0, %v742
  %v744 = vpop.f32.mrb[0].mxu0
  %745 = vmatprep.mubr.f32.mxu0 0.0
  %746 = vmatmul.mubr.f32.gmra.mrb[0].mxu0 %v43
  %v747 = vpop.f32.mrb[0].mxu0
  %v748 = vadd.f32 0.0, %v747
  %v749 = vpop.f32.mrb[0].mxu0
  %750 = vmatprep.mubr.f32.mxu0 0.0
  %751 = vmatmul.mubr.f32.gmra.mrb[0].mxu0 %v44
  %v752 = vpop.f32.mrb[0].mxu0
  %v753 = vadd.f32 0.0, %v752
  %v754 = vpop.f32.mrb[0].mxu0
  %755 = vmatprep.mubr.f32.mxu0 0.0
  %756 = vmatmul.mubr.f32.gmra.mrb[0].mxu0 %v45
  %v757 = vpop.f32.mrb[0].mxu0
  %v758 = vadd.f32 0.0, %v757
  %v759 = vpop.f32.mrb[0].mxu0
  %760 = vmatprep.mubr.f32.mxu0 0.0
  %761 = vmatmul.mubr.f32.gmra.mrb[0].mxu0 %v46
  %v762 = vpop.f32.mrb[0].mxu0
  %v763 = vadd.f32 0.0, %v762
  %v764 = vpop.f32.mrb[0].mxu0
  %765 = vmatprep.mubr.f32.mxu0 0.0
  %766 = vmatmul.mubr.f32.gmra.mrb[0].mxu0 %v47
  %v767 = vpop.f32.mrb[0].mxu0
  %v768 = vadd.f32 0.0, %v767
  %v769 = vpop.f32.mrb[0].mxu0
  %770 = vdwg.mxu0
  %v771 = vmul.f32 %v693, %v224
  %v772 = vmul.f32 %v698, %v225
  %v773 = vmul.f32 %v703, %v226
  %v774 = vmul.f32 %v708, %v227
  %v775 = vmul.f32 %v713, %v228
  %v776 = vmul.f32 %v718, %v229
  %v777 = vmul.f32 %v723, %v230
  %v778 = vmul.f32 %v728, %v231
  %v779 = vmul.f32 %v733, %v232
  %v780 = vmul.f32 %v738, %v233
  %v781 = vmul.f32 %v743, %v234
  %v782 = vmul.f32 %v748, %v235
  %v783 = vmul.f32 %v753, %v236
  %v784 = vmul.f32 %v758, %v237
  %v785 = vmul.f32 %v763, %v238
  %v786 = vmul.f32 %v768, %v239
  %787 = vmatprep.subr.mxu0 0.0
  %788 = vmatpush1.msra.mxu0 %v449
  %789 = vmatprep.subr.mxu0 0.0
  %790 = vmatpush1.msra.mxu0 %v450
  %791 = vmatprep.subr.mxu0 0.0
  %792 = vmatpush1.msra.mxu0 %v451
  %793 = vmatprep.subr.mxu0 0.0
  %794 = vmatpush1.msra.mxu0 %v452
  %795 = vmatprep.subr.mxu0 0.0
  %796 = vmatpush1.msra.mxu0 %v453
  %797 = vmatprep.subr.mxu0 0.0
  %798 = vmatpush1.msra.mxu0 %v454
  %799 = vmatprep.subr.mxu0 0.0
  %800 = vmatpush1.msra.mxu0 %v455
  %801 = vmatprep.subr.mxu0 0.0
  %802 = vmatpush1.msra.mxu0 %v456
  %803 = vmatprep.subr.mxu0 0.0
  %804 = vmatpush1.msra.mxu0 %v457
  %805 = vmatprep.subr.mxu0 0.0
  %806 = vmatpush1.msra.mxu0 %v458
  %807 = vmatprep.subr.mxu0 0.0
  %808 = vmatpush1.msra.mxu0 %v459
  %809 = vmatprep.subr.mxu0 0.0
  %810 = vmatpush1.msra.mxu0 %v460
  %811 = vmatprep.subr.mxu0 0.0
  %812 = vmatpush1.msra.mxu0 %v461
  %813 = vmatprep.subr.mxu0 0.0
  %814 = vmatpush1.msra.mxu0 %v462
  %815 = vmatprep.subr.mxu0 0.0
  %816 = vmatpush1.msra.mxu0 %v463
  %817 = vmatprep.subr.mxu0 0.0
  %818 = vmatpush1.msra.mxu0 %v464
  %819 = vmatprep.subr.mxu0 0.0
  %820 = vmatpush1.msra.mxu0 0.0
  %821 = vmatprep.subr.mxu0 0.0
  %822 = vmatpush1.msra.mxu0 0.0
  %823 = vmatprep.subr.mxu0 0.0
  %824 = vmatpush1.msra.mxu0 0.0
  %825 = vmatprep.subr.mxu0 0.0
  %826 = vmatpush1.msra.mxu0 0.0
  %827 = vmatprep.subr.mxu0 0.0
  %828 = vmatpush1.msra.mxu0 0.0
  %829 = vmatprep.subr.mxu0 0.0
  %830 = vmatpush1.msra.mxu0 0.0
  %831 = vmatprep.subr.mxu0 0.0
  %832 = vmatpush1.msra.mxu0 0.0
  %833 = vmatprep.subr.mxu0 0.0
  %834 = vmatpush1.msra.mxu0 0.0
  %835 = vmatprep.subr.mxu0 0.0
  %836 = vmatpush1.msra.mxu0 0.0
  %837 = vmatprep.subr.mxu0 0.0
  %838 = vmatpush1.msra.mxu0 0.0
  %839 = vmatprep.subr.mxu0 0.0
  %840 = vmatpush1.msra.mxu0 0.0
  %841 = vmatprep.subr.mxu0 0.0
  %842 = vmatpush1.msra.mxu0 0.0
  %843 = vmatprep.subr.mxu0 0.0
  %844 = vmatpush1.msra.mxu0 0.0
  %845 = vmatprep.subr.mxu0 0.0
  %846 = vmatpush1.msra.mxu0 0.0
  %847 = vmatprep.subr.mxu0 0.0
  %848 = vmatpush1.msra.mxu0 0.0
  %849 = vmatprep.subr.mxu0 0.0
  %850 = vmatpush1.msra.mxu0 0.0
  %851 = vmatprep.mubr.f32.mxu0 0.0
  %852 = vmatmul.mubr.f32.gmra.mrb[0].mxu0 %v64
  %v853 = vpop.f32.mrb[0].mxu0
  %v854 = vadd.f32 0.0, %v853
  %v855 = vpop.f32.mrb[0].mxu0
  %856 = vmatprep.mubr.f32.mxu0 0.0
  %857 = vmatmul.mubr.f32.gmra.mrb[0].mxu0 %v65
  %v858 = vpop.f32.mrb[0].mxu0
  %v859 = vadd.f32 0.0, %v858
  %v860 = vpop.f32.mrb[0].mxu0
  %861 = vmatprep.mubr.f32.mxu0 0.0
  %862 = vmatmul.mubr.f32.gmra.mrb[0].mxu0 %v66
  %v863 = vpop.f32.mrb[0].mxu0
  %v864 = vadd.f32 0.0, %v863
  %v865 = vpop.f32.mrb[0].mxu0
  %866 = vmatprep.mubr.f32.mxu0 0.0
  %867 = vmatmul.mubr.f32.gmra.mrb[0].mxu0 %v67
  %v868 = vpop.f32.mrb[0].mxu0
  %v869 = vadd.f32 0.0, %v868
  %v870 = vpop.f32.mrb[0].mxu0
  %871 = vmatprep.mubr.f32.mxu0 0.0
  %872 = vmatmul.mubr.f32.gmra.mrb[0].mxu0 %v68
  %v873 = vpop.f32.mrb[0].mxu0
  %v874 = vadd.f32 0.0, %v873
  %v875 = vpop.f32.mrb[0].mxu0
  %876 = vmatprep.mubr.f32.mxu0 0.0
  %877 = vmatmul.mubr.f32.gmra.mrb[0].mxu0 %v69
  %v878 = vpop.f32.mrb[0].mxu0
  %v879 = vadd.f32 0.0, %v878
  %v880 = vpop.f32.mrb[0].mxu0
  %881 = vmatprep.mubr.f32.mxu0 0.0
  %882 = vmatmul.mubr.f32.gmra.mrb[0].mxu0 %v70
  %v883 = vpop.f32.mrb[0].mxu0
  %v884 = vadd.f32 0.0, %v883
  %v885 = vpop.f32.mrb[0].mxu0
  %886 = vmatprep.mubr.f32.mxu0 0.0
  %887 = vmatmul.mubr.f32.gmra.mrb[0].mxu0 %v71
  %v888 = vpop.f32.mrb[0].mxu0
  %v889 = vadd.f32 0.0, %v888
  %v890 = vpop.f32.mrb[0].mxu0
  %891 = vmatprep.mubr.f32.mxu0 0.0
  %892 = vmatmul.mubr.f32.gmra.mrb[0].mxu0 %v72
  %v893 = vpop.f32.mrb[0].mxu0
  %v894 = vadd.f32 0.0, %v893
  %v895 = vpop.f32.mrb[0].mxu0
  %896 = vmatprep.mubr.f32.mxu0 0.0
  %897 = vmatmul.mubr.f32.gmra.mrb[0].mxu0 %v73
  %v898 = vpop.f32.mrb[0].mxu0
  %v899 = vadd.f32 0.0, %v898
  %v900 = vpop.f32.mrb[0].mxu0
  %901 = vmatprep.mubr.f32.mxu0 0.0
  %902 = vmatmul.mubr.f32.gmra.mrb[0].mxu0 %v74
  %v903 = vpop.f32.mrb[0].mxu0
  %v904 = vadd.f32 0.0, %v903
  %v905 = vpop.f32.mrb[0].mxu0
  %906 = vmatprep.mubr.f32.mxu0 0.0
  %907 = vmatmul.mubr.f32.gmra.mrb[0].mxu0 %v75
  %v908 = vpop.f32.mrb[0].mxu0
  %v909 = vadd.f32 0.0, %v908
  %v910 = vpop.f32.mrb[0].mxu0
  %911 = vmatprep.mubr.f32.mxu0 0.0
  %912 = vmatmul.mubr.f32.gmra.mrb[0].mxu0 %v76
  %v913 = vpop.f32.mrb[0].mxu0
  %v914 = vadd.f32 0.0, %v913
  %v915 = vpop.f32.mrb[0].mxu0
  %916 = vmatprep.mubr.f32.mxu0 0.0
  %917 = vmatmul.mubr.f32.gmra.mrb[0].mxu0 %v77
  %v918 = vpop.f32.mrb[0].mxu0
  %v919 = vadd.f32 0.0, %v918
  %v920 = vpop.f32.mrb[0].mxu0
  %921 = vmatprep.mubr.f32.mxu0 0.0
  %922 = vmatmul.mubr.f32.gmra.mrb[0].mxu0 %v78
  %v923 = vpop.f32.mrb[0].mxu0
  %v924 = vadd.f32 0.0, %v923
  %v925 = vpop.f32.mrb[0].mxu0
  %926 = vmatprep.mubr.f32.mxu0 0.0
  %927 = vmatmul.mubr.f32.gmra.mrb[0].mxu0 %v79
  %v928 = vpop.f32.mrb[0].mxu0
  %v929 = vadd.f32 0.0, %v928
  %v930 = vpop.f32.mrb[0].mxu0
  %931 = vdwg.mxu0
  %v932 = vmul.f32 %v854, %v288
  %v933 = vmul.f32 %v859, %v289
  %v934 = vmul.f32 %v864, %v290
  %v935 = vmul.f32 %v869, %v291
  %v936 = vmul.f32 %v874, %v292
  %v937 = vmul.f32 %v879, %v293
  %v938 = vmul.f32 %v884, %v294
  %v939 = vmul.f32 %v889, %v295
  %v940 = vmul.f32 %v894, %v296
  %v941 = vmul.f32 %v899, %v297
  %v942 = vmul.f32 %v904, %v298
  %v943 = vmul.f32 %v909, %v299
  %v944 = vmul.f32 %v914, %v300
  %v945 = vmul.f32 %v919, %v301
  %v946 = vmul.f32 %v924, %v302
  %v947 = vmul.f32 %v929, %v303
  %v948 = vadd.f32 %v80, %v449
  %v949 = vadd.f32 %v81, %v450
  %v950 = vadd.f32 %v82, %v451
  %v951 = vadd.f32 %v83, %v452
  %v952 = vadd.f32 %v84, %v453
  %v953 = vadd.f32 %v85, %v454
  %v954 = vadd.f32 %v86, %v455
  %v955 = vadd.f32 %v87, %v456
  %v956 = vadd.f32 %v88, %v457
  %v957 = vadd.f32 %v89, %v458
  %v958 = vadd.f32 %v90, %v459
  %v959 = vadd.f32 %v91, %v460
  %v960 = vadd.f32 %v92, %v461
  %v961 = vadd.f32 %v93, %v462
  %v962 = vadd.f32 %v94, %v463
  %v963 = vadd.f32 %v95, %v464
  %v964 = vadd.f32 %v948, %v771
  %v965 = vadd.f32 %v949, %v772
  %v966 = vadd.f32 %v950, %v773
  %v967 = vadd.f32 %v951, %v774
  %v968 = vadd.f32 %v952, %v775
  %v969 = vadd.f32 %v953, %v776
  %v970 = vadd.f32 %v954, %v777
  %v971 = vadd.f32 %v955, %v778
  %v972 = vadd.f32 %v956, %v779
  %v973 = vadd.f32 %v957, %v780
  %v974 = vadd.f32 %v958, %v781
  %v975 = vadd.f32 %v959, %v782
  %v976 = vadd.f32 %v960, %v783
  %v977 = vadd.f32 %v961, %v784
  %v978 = vadd.f32 %v962, %v785
  %v979 = vadd.f32 %v963, %v786
  %v980 = vrcp.pop 3.0
  %v981 = vmul.f32 %v964, %v980
  %v982 = vmul.f32 %v965, %v980
  %v983 = vmul.f32 %v966, %v980
  %v984 = vmul.f32 %v967, %v980
  %v985 = vmul.f32 %v968, %v980
  %v986 = vmul.f32 %v969, %v980
  %v987 = vmul.f32 %v970, %v980
  %v988 = vmul.f32 %v971, %v980
  %v989 = vmul.f32 %v972, %v980
  %v990 = vmul.f32 %v973, %v980
  %v991 = vmul.f32 %v974, %v980
  %v992 = vmul.f32 %v975, %v980
  %v993 = vmul.f32 %v976, %v980
  %v994 = vmul.f32 %v977, %v980
  %v995 = vmul.f32 %v978, %v980
  %v996 = vmul.f32 %v979, %v980
  %997 = vst [vmem:[%s3] sm:$0xff] %v981
  %998 = vst [vmem:[%s3 + $0x8] sm:$0xff] %v982
  %999 = vst [vmem:[%s3 + $0x10] sm:$0xff] %v983
  %1000 = vst [vmem:[%s3 + $0x18] sm:$0xff] %v984
  %1001 = vst [vmem:[%s3 + $0x20] sm:$0xff] %v985
  %1002 = vst [vmem:[%s3 + $0x28] sm:$0xff] %v986
  %1003 = vst [vmem:[%s3 + $0x30] sm:$0xff] %v987
  %1004 = vst [vmem:[%s3 + $0x38] sm:$0xff] %v988
  %1005 = vst [vmem:[%s3 + $0x40] sm:$0xff] %v989
  %1006 = vst [vmem:[%s3 + $0x48] sm:$0xff] %v990
  %1007 = vst [vmem:[%s3 + $0x50] sm:$0xff] %v991
  %1008 = vst [vmem:[%s3 + $0x58] sm:$0xff] %v992
  %1009 = vst [vmem:[%s3 + $0x60] sm:$0xff] %v993
  %1010 = vst [vmem:[%s3 + $0x68] sm:$0xff] %v994
  %1011 = vst [vmem:[%s3 + $0x70] sm:$0xff] %v995
  %1012 = vst [vmem:[%s3 + $0x78] sm:$0xff] %v996
  %v1013 = vadd.f32 %v96, %v610
  %v1014 = vadd.f32 %v97, %v611
  %v1015 = vadd.f32 %v98, %v612
  %v1016 = vadd.f32 %v99, %v613
  %v1017 = vadd.f32 %v100, %v614
  %v1018 = vadd.f32 %v101, %v615
  %v1019 = vadd.f32 %v102, %v616
  %v1020 = vadd.f32 %v103, %v617
  %v1021 = vadd.f32 %v104, %v618
  %v1022 = vadd.f32 %v105, %v619
  %v1023 = vadd.f32 %v106, %v620
  %v1024 = vadd.f32 %v107, %v621
  %v1025 = vadd.f32 %v108, %v622
  %v1026 = vadd.f32 %v109, %v623
  %v1027 = vadd.f32 %v110, %v624
  %v1028 = vadd.f32 %v111, %v625
  %v1029 = vadd.f32 %v1013, %v932
  %v1030 = vadd.f32 %v1014, %v933
  %v1031 = vadd.f32 %v1015, %v934
  %v1032 = vadd.f32 %v1016, %v935
  %v1033 = vadd.f32 %v1017, %v936
  %v1034 = vadd.f32 %v1018, %v937
  %v1035 = vadd.f32 %v1019, %v938
  %v1036 = vadd.f32 %v1020, %v939
  %v1037 = vadd.f32 %v1021, %v940
  %v1038 = vadd.f32 %v1022, %v941
  %v1039 = vadd.f32 %v1023, %v942
  %v1040 = vadd.f32 %v1024, %v943
  %v1041 = vadd.f32 %v1025, %v944
  %v1042 = vadd.f32 %v1026, %v945
  %v1043 = vadd.f32 %v1027, %v946
  %v1044 = vadd.f32 %v1028, %v947
  %v1045 = vmul.f32 %v1029, %v980
  %v1046 = vmul.f32 %v1030, %v980
  %v1047 = vmul.f32 %v1031, %v980
  %v1048 = vmul.f32 %v1032, %v980
  %v1049 = vmul.f32 %v1033, %v980
  %v1050 = vmul.f32 %v1034, %v980
  %v1051 = vmul.f32 %v1035, %v980
  %v1052 = vmul.f32 %v1036, %v980
  %v1053 = vmul.f32 %v1037, %v980
  %v1054 = vmul.f32 %v1038, %v980
  %v1055 = vmul.f32 %v1039, %v980
  %v1056 = vmul.f32 %v1040, %v980
  %v1057 = vmul.f32 %v1041, %v980
  %v1058 = vmul.f32 %v1042, %v980
  %v1059 = vmul.f32 %v1043, %v980
  %v1060 = vmul.f32 %v1044, %v980
  %1061 = vst [vmem:[%s4] sm:$0xff] %v1045
  %1062 = vst [vmem:[%s4 + $0x8] sm:$0xff] %v1046
  %1063 = vst [vmem:[%s4 + $0x10] sm:$0xff] %v1047
  %1064 = vst [vmem:[%s4 + $0x18] sm:$0xff] %v1048
  %1065 = vst [vmem:[%s4 + $0x20] sm:$0xff] %v1049
  %1066 = vst [vmem:[%s4 + $0x28] sm:$0xff] %v1050
  %1067 = vst [vmem:[%s4 + $0x30] sm:$0xff] %v1051
  %1068 = vst [vmem:[%s4 + $0x38] sm:$0xff] %v1052
  %1069 = vst [vmem:[%s4 + $0x40] sm:$0xff] %v1053
  %1070 = vst [vmem:[%s4 + $0x48] sm:$0xff] %v1054
  %1071 = vst [vmem:[%s4 + $0x50] sm:$0xff] %v1055
  %1072 = vst [vmem:[%s4 + $0x58] sm:$0xff] %v1056
  %1073 = vst [vmem:[%s4 + $0x60] sm:$0xff] %v1057
  %1074 = vst [vmem:[%s4 + $0x68] sm:$0xff] %v1058
  %1075 = vst [vmem:[%s4 + $0x70] sm:$0xff] %v1059
  %1076 = vst [vmem:[%s4 + $0x78] sm:$0xff] %v1060
  // Predicated region
  $region14: #{two_layer_lightgcn.1} parent=0 // pred_check
    _
  $region15: #{two_layer_lightgcn.1} parent=0 // pred_check_branch
    %1078 = sbr.rel (0) target = $region17
  $region16: #{two_layer_lightgcn.1} parent=0 // pred_region
    _
  $region17: #{two_layer_lightgcn.1} parent=0 // pred_fallthru
    _
  // Predicated region
  $region18: #{two_layer_lightgcn.1} parent=0 // pred_check
    _
  $region19: #{two_layer_lightgcn.1} parent=0 // pred_check_branch
    %1080 = sbr.rel (0) target = $region21
  $region20: #{two_layer_lightgcn.1} parent=0 // pred_region
    _
  $region21: #{two_layer_lightgcn.1} parent=0 // pred_fallthru
    _
  // Predicated region
  $region22: #{two_layer_lightgcn.1} parent=0 // pred_check
    _
  $region23: #{two_layer_lightgcn.1} parent=0 // pred_check_branch
    %1082 = sbr.rel (0) target = $region25
  $region24: #{two_layer_lightgcn.1} parent=0 // pred_region
    _
  $region25: #{two_layer_lightgcn.1} parent=0 // pred_fallthru
    _
  // Predicated region
  $region26: #{two_layer_lightgcn.1} parent=0 // pred_check
    _
  $region27: #{two_layer_lightgcn.1} parent=0 // pred_check_branch
    %1084 = sbr.rel (0) target = $region29
  $region28: #{two_layer_lightgcn.1} parent=0 // pred_region
    _
  $region29: #{two_layer_lightgcn.1} parent=0 // pred_fallthru
    _

</llo_original>
